<compile_context>
chip_gen: v6e
topology: v6e:2x2x1
jax: 0.10.0
libtpu: 0.0.40
codegen_flags: <defaults>
</compile_context>

<pallas_src>
import numpy as np
import jax
import jax.numpy as jnp
from jax.experimental import pallas as pl
from jax.experimental.pallas import tpu as pltpu


def _vmem_capacity_bytes():
    """Physical VMEM per TensorCore; conservative default if the query fails."""
    try:
        cap = getattr(pltpu.get_tpu_info(), "vmem_capacity_bytes", None)
        if cap:
            return int(cap)
    except Exception:
        pass
    return 64 << 20  # v7x-sized (smallest current generation) -> always safe


def _reflection_weights(taps, pad, L, L_out):
    """(K, pad) matrices mapping the first / last K input columns of x to the
    first / last `pad` reflect-padded output columns."""
    K = len(taps)
    wl = np.zeros((K, pad), np.float32)
    wr = np.zeros((K, pad), np.float32)
    for t in range(pad):                      # left edge: out[:, t]
        for k in range(K):
            j = abs(t + k - pad)              # reflected source column of x
            wl[j, t] += taps[k]
    for s in range(pad):                      # right edge: out[:, L_out-pad+s]
        t = L_out - pad + s
        for k in range(K):
            i = t + k                         # index into the padded signal
            col = (i - pad) if i < pad + L else (2 * L + pad - 2 - i)
            wr[col - (L - K), s] += taps[k]   # relative to x[:, L-K:L]
    return wl, wr


def _build_kernel(taps, pad, L, L_out):
    """taps: tuple of Python floats (already normalized, f32-rounded)."""
    K = len(taps)
    w_in = L - K + 1                          # 'valid' interior output width

    if pad == 0:                              # K == 1: pure per-sample scale
        def kernel(x_ref, o_ref):
            o_ref[...] = (taps[0] * x_ref[...].astype(jnp.float32)
                          ).astype(o_ref.dtype)
        return kernel

    def kernel(x_ref, wl_ref, wr_ref, o_ref):
        # Interior: K shifted FMAs straight from x_ref (no scratch copy).
        acc = taps[0] * x_ref[:, 0:w_in].astype(jnp.float32)
        for k in range(1, K):
            acc = acc + taps[k] * x_ref[:, k:k + w_in].astype(jnp.float32)

        # Reflect boundary columns: two tiny matmuls on the otherwise-idle MXU
        # (vectorized edge fix-up, no per-column masked stores).
        left = jnp.dot(x_ref[:, 0:K].astype(jnp.float32), wl_ref[...],
                       preferred_element_type=jnp.float32,
                       precision=jax.lax.Precision.HIGHEST)
        right = jnp.dot(x_ref[:, L - K:L].astype(jnp.float32), wr_ref[...],
                        preferred_element_type=jnp.float32,
                        precision=jax.lax.Precision.HIGHEST)

        out = jnp.concatenate([left, acc, right], axis=1)     # (rows, L_out)
        o_ref[...] = out.astype(o_ref.dtype)

    return kernel


def simple_filter_1d(x, filter_window, *, row_tile=None):
    """Forward pass of SimpleFilter1d.

    x:             (N, C, L) array (any float dtype; output keeps that dtype)
    filter_window: (K,) un-normalized filter taps (static, like the buffer)
    returns:       (N, C, L + 2*(K//2) - K + 1)
    """
    # Normalize taps exactly like the PyTorch __init__ (numpy, then f32 cast).
    w = np.asarray(filter_window)
    w = w / np.sum(w)
    taps = tuple(float(t) for t in np.reshape(w, (-1,)).astype(np.float32))
    K = len(taps)
    pad = K // 2

    N, C, L = x.shape
    if K > 1 and L < K:
        # TODO(synk): tiny-L (< K) inputs would need the padded-window path.
        raise ValueError("simple_filter_1d requires L >= len(filter_window)")
    L_out = L + 2 * pad - K + 1
    R = N * C

    x2 = x.reshape(R, L)                      # free reshape, no data move
    in_itemsize = x2.dtype.itemsize
    out_dtype = x2.dtype
    out_itemsize = jnp.dtype(out_dtype).itemsize

    cap = _vmem_capacity_bytes()

    # Row tile: big contiguous blocks for DMA efficiency; generation aware.
    if row_tile is None:
        target_in_bytes = (8 << 20) if cap >= (96 << 20) else (4 << 20)
        rt = max(1, target_in_bytes // max(1, L * in_itemsize))
        row_tile = R if rt >= R else max(8, (rt // 8) * 8)
    row_tile = min(int(row_tile), R)
    if row_tile != R and row_tile % 8 != 0:   # (8,128) block constraint
        row_tile = min(R, max(8, (row_tile // 8) * 8))
    grid = (pl.cdiv(R, row_tile),)

    # VMEM budget: double-buffered in/out blocks + f32 compute temporaries,
    # capped at half the physical per-core VMEM (headroom for the compiler).
    need = (2 * row_tile * L * in_itemsize
            + 2 * row_tile * L_out * out_itemsize
            + 3 * row_tile * max(L, L_out) * 4)
    vmem_limit = int(min(cap // 2, max(32 << 20, need + (4 << 20))))

    kernel = _build_kernel(taps, pad, L, L_out)

    x_spec = pl.BlockSpec((row_tile, L), lambda i: (i, 0))
    out_spec = pl.BlockSpec((row_tile, L_out), lambda i: (i, 0))

    if pad > 0:
        wl, wr = _reflection_weights(taps, pad, L, L_out)
        in_specs = [x_spec,
                    pl.BlockSpec((K, pad), lambda i: (0, 0)),
                    pl.BlockSpec((K, pad), lambda i: (0, 0))]
        args = (x2, jnp.asarray(wl), jnp.asarray(wr))
    else:
        in_specs = [x_spec]
        args = (x2,)

    out2 = pl.pallas_call(
        kernel,
        out_shape=jax.ShapeDtypeStruct((R, L_out), out_dtype),
        grid_spec=pltpu.PrefetchScalarGridSpec(
            num_scalar_prefetch=0,
            grid=grid,
            in_specs=in_specs,
            out_specs=out_spec,
        ),
        compiler_params=pltpu.CompilerParams(
            dimension_semantics=("parallel",),   # rows independent -> megacore
            vmem_limit_bytes=vmem_limit,
        ),
        cost_estimate=pl.CostEstimate(
            flops=2 * K * R * L_out,
            transcendentals=0,
            bytes_accessed=R * L * in_itemsize + R * L_out * out_itemsize,
        ),
    )(*args)

    return out2.reshape(N, C, L_out)


def _reference(x, filter_window):
    """Pure-JAX reference with identical semantics."""
    w = np.asarray(filter_window)
    w = (w / np.sum(w)).astype(np.float32)
    K = len(w)
    pad = K // 2
    xp = jnp.pad(x.astype(jnp.float32), ((0, 0), (0, 0), (pad, pad)),
                 mode="reflect")
    L_out = xp.shape[-1] - K + 1
    out = sum(float(w[k]) * xp[:, :, k:k + L_out] for k in range(K))
    return out.astype(x.dtype)


if __name__ == "__main__":
    key = jax.random.PRNGKey(0)
    k1, k2 = jax.random.split(key)

    # --- test 1: module-style small case (odd K -> 'same' output length) ----
    N, C, L = 2, 4, 16
    x = jax.random.normal(k1, (N, C, L), dtype=jnp.float32)
    filt = np.array([1.0, 2.0, 3.0, 2.0, 1.0], dtype=np.float32)   # K = 5

    out = jax.block_until_ready(simple_filter_1d(x, filt))
    ref = _reference(x, filt)
    assert out.shape == (N, C, L)
    np.testing.assert_allclose(np.asarray(out), np.asarray(ref),
                               rtol=1e-5, atol=1e-5)

    # --- test 2: multi-block grid path (forced small row tile), even K ------
    N2, C2, L2 = 4, 8, 128
    x2 = jax.random.normal(k2, (N2, C2, L2), dtype=jnp.float32)
    filt2 = np.array([1.0, 3.0, 3.0, 1.0], dtype=np.float32)       # K = 4
    out2 = jax.block_until_ready(simple_filter_1d(x2, filt2, row_tile=8))
    ref2 = _reference(x2, filt2)
    assert out2.shape == (N2, C2, L2 + 1)   # even K -> L + 1 (matches PyTorch)
    np.testing.assert_allclose(np.asarray(out2), np.asarray(ref2),
                               rtol=1e-5, atol=1e-5)

    print("KERNEL_OK")
</pallas_src>

<mosaic_0001>
module attributes {stable_mosaic.version = 11 : i64} {
  func.func @kernel(%arg0: i32, %arg1: memref<8x16xf32, #tpu.memory_space<vmem>>, %arg2: memref<5x2xf32, #tpu.memory_space<vmem>>, %arg3: memref<5x2xf32, #tpu.memory_space<vmem>>, %arg4: memref<8x16xf32, #tpu.memory_space<vmem>>) attributes {dimension_semantics = [#tpu.dimension_semantics<parallel>], iteration_bounds = array<i64: 1>, scalar_prefetch = 0 : i64, scratch_operands = 0 : i64, tpu.core_type = #tpu.core_type<tc>, window_params = [{transform_indices = @transform_0, window_bounds = array<i64: 8, 16>}, {pipeline_mode = #tpu.pipeline_mode<synchronous>, transform_indices = @transform_1, window_bounds = array<i64: 5, 2>}, {pipeline_mode = #tpu.pipeline_mode<synchronous>, transform_indices = @transform_2, window_bounds = array<i64: 5, 2>}, {transform_indices = @transform_3, window_bounds = array<i64: 8, 16>}]} {
    %c0 = arith.constant 0 : index
    %c0_0 = arith.constant 0 : index
    %0 = vector.load %arg1[%c0, %c0_0] : memref<8x16xf32, #tpu.memory_space<vmem>>, vector<8x12xf32>
    %cst = arith.constant 0.111111112 : f32
    %1 = vector.broadcast %cst : f32 to vector<8x12xf32>
    %2 = arith.mulf %1, %0 : vector<8x12xf32>
    %c0_1 = arith.constant 0 : index
    %c1 = arith.constant 1 : index
    %3 = vector.load %arg1[%c0_1, %c1] : memref<8x16xf32, #tpu.memory_space<vmem>>, vector<8x12xf32>
    %cst_2 = arith.constant 0.222222224 : f32
    %4 = vector.broadcast %cst_2 : f32 to vector<8x12xf32>
    %5 = arith.mulf %4, %3 : vector<8x12xf32>
    %6 = arith.addf %2, %5 : vector<8x12xf32>
    %c0_3 = arith.constant 0 : index
    %c2 = arith.constant 2 : index
    %7 = vector.load %arg1[%c0_3, %c2] : memref<8x16xf32, #tpu.memory_space<vmem>>, vector<8x12xf32>
    %cst_4 = arith.constant 0.333333343 : f32
    %8 = vector.broadcast %cst_4 : f32 to vector<8x12xf32>
    %9 = arith.mulf %8, %7 : vector<8x12xf32>
    %10 = arith.addf %6, %9 : vector<8x12xf32>
    %c0_5 = arith.constant 0 : index
    %c3 = arith.constant 3 : index
    %11 = vector.load %arg1[%c0_5, %c3] : memref<8x16xf32, #tpu.memory_space<vmem>>, vector<8x12xf32>
    %cst_6 = arith.constant 0.222222224 : f32
    %12 = vector.broadcast %cst_6 : f32 to vector<8x12xf32>
    %13 = arith.mulf %12, %11 : vector<8x12xf32>
    %14 = arith.addf %10, %13 : vector<8x12xf32>
    %c0_7 = arith.constant 0 : index
    %c4 = arith.constant 4 : index
    %15 = vector.load %arg1[%c0_7, %c4] : memref<8x16xf32, #tpu.memory_space<vmem>>, vector<8x12xf32>
    %cst_8 = arith.constant 0.111111112 : f32
    %16 = vector.broadcast %cst_8 : f32 to vector<8x12xf32>
    %17 = arith.mulf %16, %15 : vector<8x12xf32>
    %18 = arith.addf %14, %17 : vector<8x12xf32>
    %c0_9 = arith.constant 0 : index
    %c0_10 = arith.constant 0 : index
    %19 = vector.load %arg1[%c0_9, %c0_10] : memref<8x16xf32, #tpu.memory_space<vmem>>, vector<8x5xf32>
    %c0_11 = arith.constant 0 : index
    %c0_12 = arith.constant 0 : index
    %20 = vector.load %arg2[%c0_11, %c0_12] : memref<5x2xf32, #tpu.memory_space<vmem>>, vector<5x2xf32>
    %cst_13 = arith.constant dense<0.000000e+00> : vector<8x2xf32>
    %21 = tpu.matmul %19, %20, %cst_13 {dimension_numbers = #tpu.dot_dimension_numbers<[1], [0], [0], [1], [0, 0, 1, 1], [], []>, precision = #tpu.contract_precision<fp32>} : vector<8x5xf32>, vector<5x2xf32>, vector<8x2xf32> -> vector<8x2xf32>
    %c0_14 = arith.constant 0 : index
    %c11 = arith.constant 11 : index
    %22 = vector.load %arg1[%c0_14, %c11] : memref<8x16xf32, #tpu.memory_space<vmem>>, vector<8x5xf32>
    %c0_15 = arith.constant 0 : index
    %c0_16 = arith.constant 0 : index
    %23 = vector.load %arg3[%c0_15, %c0_16] : memref<5x2xf32, #tpu.memory_space<vmem>>, vector<5x2xf32>
    %cst_17 = arith.constant dense<0.000000e+00> : vector<8x2xf32>
    %24 = tpu.matmul %22, %23, %cst_17 {dimension_numbers = #tpu.dot_dimension_numbers<[1], [0], [0], [1], [0, 0, 1, 1], [], []>, precision = #tpu.contract_precision<fp32>} : vector<8x5xf32>, vector<5x2xf32>, vector<8x2xf32> -> vector<8x2xf32>
    %25 = tpu.concatenate %21, %18, %24 in 1 : vector<8x2xf32>, vector<8x12xf32>, vector<8x2xf32> -> vector<8x16xf32>
    %c0_18 = arith.constant 0 : index
    %c0_19 = arith.constant 0 : index
    %26 = vector.load %arg4[%c0_18, %c0_19] : memref<8x16xf32, #tpu.memory_space<vmem>>, vector<8x16xf32>
    tpu.vector_store %arg4[%c0_18, %c0_19], %25 {strides = array<i32>} : memref<8x16xf32, #tpu.memory_space<vmem>>, vector<8x16xf32>,
    return
  }
  func.func @transform_0(%arg0: i32) -> (i32, i32) {
    %c0_i32 = arith.constant 0 : i32
    %c0_i32_0 = arith.constant 0 : i32
    return %arg0, %c0_i32 : i32, i32
  }
  func.func @transform_1(%arg0: i32) -> (i32, i32) {
    %c0_i32 = arith.constant 0 : i32
    %c0_i32_0 = arith.constant 0 : i32
    %c0_i32_1 = arith.constant 0 : i32
    return %c0_i32, %c0_i32_0 : i32, i32
  }
  func.func @transform_2(%arg0: i32) -> (i32, i32) {
    %c0_i32 = arith.constant 0 : i32
    %c0_i32_0 = arith.constant 0 : i32
    %c0_i32_1 = arith.constant 0 : i32
    return %c0_i32, %c0_i32_0 : i32, i32
  }
  func.func @transform_3(%arg0: i32) -> (i32, i32) {
    %c0_i32 = arith.constant 0 : i32
    %c0_i32_0 = arith.constant 0 : i32
    return %arg0, %c0_i32 : i32, i32
  }
}

</mosaic_0001>

<llo_original>
// kernel: tpu_custom_call.1
$region0: #{tpu_custom_call.1}
  #allocation0 [shape = 'u32[]', space=smem, size = 0x4, offset = 0x4, fixed_abs, tag = 'smem constant byte address 0x4 - core index']
  #allocation1 [shape = 'u32[144,128]{1,0:T(1,128)}', space=vmem, size = 0x12000, scoped, tag = 'internal scratch']
  %s0 = inlined_call_operand.vmem [shape: f32[8,16], index: 0, kind: input, shape index: {}]
  %s1 = inlined_call_operand.vmem [shape: f32[5,2], index: 1, kind: input, shape index: {}]
  %s2 = inlined_call_operand.vmem [shape: f32[5,2], index: 2, kind: input, shape index: {}]
  %s3 = inlined_call_operand.hbm [shape: f32[8,16], index: 3, kind: output, shape index: {}]
  %s4 = sld [smem:[#allocation0]]
  $region22: #{tpu_custom_call.1} parent=0
    _
  %s6 = ssub.s32 1, %s4
  %s7 = scalar_select 0, %s6, %s4
  $region1: #{tpu_custom_call.1} parent=0
    #allocation2 [shape = 'u8[4096]{0}', space=vmem, size = 0x1000, scoped, tag = 'output window, operand 0, single buffered']
    #allocation3 [shape = 's32[1]{0}', space=sflag, size = 0x4, scoped, tag = 'scoped memory for tpu_custom_call.1']
    %8 = vsyncpa [#allocation3], 0
    // Predicated region
    $region2: #{tpu_custom_call.1} parent=1 // pred_check
      _
    $region3: #{tpu_custom_call.1} parent=1 // pred_check_branch
      %10 = sbr.rel (0) target = $region5
    $region4: #{tpu_custom_call.1} parent=1 // pred_region
      _
    $region5: #{tpu_custom_call.1} parent=1 // pred_fallthru
      _
    // Predicated region
    $region6: #{tpu_custom_call.1} parent=1 // pred_check
      _
    $region7: #{tpu_custom_call.1} parent=1 // pred_check_branch
      %12 = sbr.rel (0) target = $region9
    $region8: #{tpu_custom_call.1} parent=1 // pred_region
      _
    $region9: #{tpu_custom_call.1} parent=1 // pred_fallthru
      _
    // Predicated region
    $region10: #{tpu_custom_call.1} parent=1 // pred_check
      _
    $region11: #{tpu_custom_call.1} parent=1 // pred_check_branch
      %14 = sbr.rel (0) target = $region13
    $region12: #{tpu_custom_call.1} parent=1 // pred_region
      _
    $region13: #{tpu_custom_call.1} parent=1 // pred_fallthru
      _
    %v15 = vld [vmem:[%s0] sm:$0xff]
    %v16 = vmul.f32 %v15, 0.11111111
    %v17 = vmul.f32 %v15, 0.22222222
    %19 = vrot.lane.b32.xlu0 %v17, 127
    %v20 = vpop.permute.xlu0 %19
    %v22 = vadd.f32 %v16, %v20
    %v23 = vmul.f32 %v15, 0.33333334
    %25 = vrot.lane.b32.xlu0 %v23, 126
    %v26 = vpop.permute.xlu0 %25
    %v28 = vadd.f32 %v22, %v26
    %29 = vrot.lane.b32.xlu0 %v17, 125
    %v30 = vpop.permute.xlu0 %29
    %v32 = vadd.f32 %v28, %v30
    %34 = vrot.lane.b32.xlu0 %v16, 124
    %v35 = vpop.permute.xlu0 %34
    %v37 = vadd.f32 %v32, %v35
    %v38 = vld [vmem:[%s1] sm:$0x1f]
    %vm39 = vcmask 39936
    %v41 = vsel %vm39, %v15, 0
    %vm43 = vcmask 1044480
    %v45 = vsel %vm43, %v38, 0
    %47 = vmatprep.subr.mxu0 0.0
    %48 = vmatpush1.msra.mxu0 0.0
    %49 = vmatprep.subr.mxu0 0.0
    %50 = vmatpush1.msra.mxu0 0.0
    %51 = vmatprep.subr.mxu0 0.0
    %52 = vmatpush1.msra.mxu0 0.0
    %53 = vmatprep.subr.mxu0 0.0
    %54 = vmatpush1.msra.mxu0 0.0
    %55 = vmatprep.subr.mxu0 0.0
    %56 = vmatpush1.msra.mxu0 0.0
    %57 = vmatprep.subr.mxu0 0.0
    %58 = vmatpush1.msra.mxu0 0.0
    %59 = vmatprep.subr.mxu0 0.0
    %60 = vmatpush1.msra.mxu0 0.0
    %61 = vmatprep.subr.mxu0 0.0
    %62 = vmatpush1.msra.mxu0 0.0
    %63 = vmatprep.subr.mxu0 0.0
    %64 = vmatpush1.msra.mxu0 0.0
    %65 = vmatprep.subr.mxu0 0.0
    %66 = vmatpush1.msra.mxu0 0.0
    %67 = vmatprep.subr.mxu0 0.0
    %68 = vmatpush1.msra.mxu0 0.0
    %69 = vmatprep.subr.mxu0 0.0
    %70 = vmatpush1.msra.mxu0 0.0
    %71 = vmatprep.subr.mxu0 0.0
    %72 = vmatpush1.msra.mxu0 0.0
    %73 = vmatprep.subr.mxu0 0.0
    %74 = vmatpush1.msra.mxu0 0.0
    %75 = vmatprep.subr.mxu0 0.0
    %76 = vmatpush1.msra.mxu0 0.0
    %77 = vmatprep.subr.mxu0 0.0
    %v78 = vand.u32 %v45, 4294901760
    %79 = vmatpush1.msra.mxu0 %v78
    %80 = vmatprep.subr.mxu0 0.0
    %81 = vmatpush2.msra.mxu0 0.0
    %82 = vmatprep.subr.mxu0 0.0
    %83 = vmatpush2.msra.mxu0 0.0
    %84 = vmatprep.subr.mxu0 0.0
    %85 = vmatpush2.msra.mxu0 0.0
    %86 = vmatprep.subr.mxu0 0.0
    %87 = vmatpush2.msra.mxu0 0.0
    %88 = vmatprep.subr.mxu0 0.0
    %89 = vmatpush2.msra.mxu0 0.0
    %90 = vmatprep.subr.mxu0 0.0
    %91 = vmatpush2.msra.mxu0 0.0
    %92 = vmatprep.subr.mxu0 0.0
    %93 = vmatpush2.msra.mxu0 0.0
    %94 = vmatprep.subr.mxu0 0.0
    %95 = vmatpush2.msra.mxu0 0.0
    %96 = vmatprep.subr.mxu0 0.0
    %97 = vmatpush2.msra.mxu0 0.0
    %98 = vmatprep.subr.mxu0 0.0
    %99 = vmatpush2.msra.mxu0 0.0
    %100 = vmatprep.subr.mxu0 0.0
    %101 = vmatpush2.msra.mxu0 0.0
    %102 = vmatprep.subr.mxu0 0.0
    %103 = vmatpush2.msra.mxu0 0.0
    %104 = vmatprep.subr.mxu0 0.0
    %105 = vmatpush2.msra.mxu0 0.0
    %106 = vmatprep.subr.mxu0 0.0
    %107 = vmatpush2.msra.mxu0 0.0
    %108 = vmatprep.subr.mxu0 0.0
    %109 = vmatpush2.msra.mxu0 0.0
    %110 = vmatprep.subr.mxu0 0.0
    %111 = vmatpush2.msra.mxu0 0.0
    %112 = vmatprep.mubr.f32.mxu0 0.0
    %v113 = vand.u32 %v41, 4294901760
    %v114 = vsub.f32 %v41, %v113
    %v115 = vand.u32 %v114, 4294901760
    %v116 = vsub.f32 %v114, %v115
    %v117 = vand.u32 %v116, 4294901760
    %118 = vmatmul.mubr.f32.gmra.mxu0 %v117
    %v119 = vpop.f32.mrf.mxu0
    %v120 = vadd.f32 0.0, %v119
    %v121 = vpop.f32.mrf.mxu0
    %122 = vdwg.mxu0
    %123 = vmatprep.subr.mxu0 0.0
    %124 = vmatpush1.msra.mxu0 0.0
    %125 = vmatprep.subr.mxu0 0.0
    %126 = vmatpush1.msra.mxu0 0.0
    %127 = vmatprep.subr.mxu0 0.0
    %128 = vmatpush1.msra.mxu0 0.0
    %129 = vmatprep.subr.mxu0 0.0
    %130 = vmatpush1.msra.mxu0 0.0
    %131 = vmatprep.subr.mxu0 0.0
    %132 = vmatpush1.msra.mxu0 0.0
    %133 = vmatprep.subr.mxu0 0.0
    %134 = vmatpush1.msra.mxu0 0.0
    %135 = vmatprep.subr.mxu0 0.0
    %136 = vmatpush1.msra.mxu0 0.0
    %137 = vmatprep.subr.mxu0 0.0
    %138 = vmatpush1.msra.mxu0 0.0
    %139 = vmatprep.subr.mxu0 0.0
    %140 = vmatpush1.msra.mxu0 0.0
    %141 = vmatprep.subr.mxu0 0.0
    %142 = vmatpush1.msra.mxu0 0.0
    %143 = vmatprep.subr.mxu0 0.0
    %144 = vmatpush1.msra.mxu0 0.0
    %145 = vmatprep.subr.mxu0 0.0
    %146 = vmatpush1.msra.mxu0 0.0
    %147 = vmatprep.subr.mxu0 0.0
    %148 = vmatpush1.msra.mxu0 0.0
    %149 = vmatprep.subr.mxu0 0.0
    %150 = vmatpush1.msra.mxu0 0.0
    %151 = vmatprep.subr.mxu0 0.0
    %152 = vmatpush1.msra.mxu0 0.0
    %153 = vmatprep.subr.mxu0 0.0
    %v154 = vand.u32 %v45, 4294901760
    %v155 = vsub.f32 %v45, %v154
    %v156 = vand.u32 %v155, 4294901760
    %v157 = vsub.f32 %v155, %v156
    %v158 = vand.u32 %v157, 4294901760
    %159 = vmatpush1.msra.mxu0 %v158
    %160 = vmatprep.subr.mxu0 0.0
    %161 = vmatpush2.msra.mxu0 0.0
    %162 = vmatprep.subr.mxu0 0.0
    %163 = vmatpush2.msra.mxu0 0.0
    %164 = vmatprep.subr.mxu0 0.0
    %165 = vmatpush2.msra.mxu0 0.0
    %166 = vmatprep.subr.mxu0 0.0
    %167 = vmatpush2.msra.mxu0 0.0
    %168 = vmatprep.subr.mxu0 0.0
    %169 = vmatpush2.msra.mxu0 0.0
    %170 = vmatprep.subr.mxu0 0.0
    %171 = vmatpush2.msra.mxu0 0.0
    %172 = vmatprep.subr.mxu0 0.0
    %173 = vmatpush2.msra.mxu0 0.0
    %174 = vmatprep.subr.mxu0 0.0
    %175 = vmatpush2.msra.mxu0 0.0
    %176 = vmatprep.subr.mxu0 0.0
    %177 = vmatpush2.msra.mxu0 0.0
    %178 = vmatprep.subr.mxu0 0.0
    %179 = vmatpush2.msra.mxu0 0.0
    %180 = vmatprep.subr.mxu0 0.0
    %181 = vmatpush2.msra.mxu0 0.0
    %182 = vmatprep.subr.mxu0 0.0
    %183 = vmatpush2.msra.mxu0 0.0
    %184 = vmatprep.subr.mxu0 0.0
    %185 = vmatpush2.msra.mxu0 0.0
    %186 = vmatprep.subr.mxu0 0.0
    %187 = vmatpush2.msra.mxu0 0.0
    %188 = vmatprep.subr.mxu0 0.0
    %189 = vmatpush2.msra.mxu0 0.0
    %190 = vmatprep.subr.mxu0 0.0
    %191 = vmatpush2.msra.mxu0 0.0
    %192 = vmatprep.mubr.f32.mxu0 0.0
    %v193 = vand.u32 %v41, 4294901760
    %194 = vmatmul.mubr.f32.gmra.mxu0 %v193
    %v195 = vpop.f32.mrf.mxu0
    %v196 = vadd.f32 %v120, %v195
    %v197 = vpop.f32.mrf.mxu0
    %198 = vdwg.mxu0
    %199 = vmatprep.subr.mxu0 0.0
    %200 = vmatpush1.msra.mxu0 0.0
    %201 = vmatprep.subr.mxu0 0.0
    %202 = vmatpush1.msra.mxu0 0.0
    %203 = vmatprep.subr.mxu0 0.0
    %204 = vmatpush1.msra.mxu0 0.0
    %205 = vmatprep.subr.mxu0 0.0
    %206 = vmatpush1.msra.mxu0 0.0
    %207 = vmatprep.subr.mxu0 0.0
    %208 = vmatpush1.msra.mxu0 0.0
    %209 = vmatprep.subr.mxu0 0.0
    %210 = vmatpush1.msra.mxu0 0.0
    %211 = vmatprep.subr.mxu0 0.0
    %212 = vmatpush1.msra.mxu0 0.0
    %213 = vmatprep.subr.mxu0 0.0
    %214 = vmatpush1.msra.mxu0 0.0
    %215 = vmatprep.subr.mxu0 0.0
    %216 = vmatpush1.msra.mxu0 0.0
    %217 = vmatprep.subr.mxu0 0.0
    %218 = vmatpush1.msra.mxu0 0.0
    %219 = vmatprep.subr.mxu0 0.0
    %220 = vmatpush1.msra.mxu0 0.0
    %221 = vmatprep.subr.mxu0 0.0
    %222 = vmatpush1.msra.mxu0 0.0
    %223 = vmatprep.subr.mxu0 0.0
    %224 = vmatpush1.msra.mxu0 0.0
    %225 = vmatprep.subr.mxu0 0.0
    %226 = vmatpush1.msra.mxu0 0.0
    %227 = vmatprep.subr.mxu0 0.0
    %228 = vmatpush1.msra.mxu0 0.0
    %229 = vmatprep.subr.mxu0 0.0
    %v230 = vand.u32 %v45, 4294901760
    %v231 = vsub.f32 %v45, %v230
    %232 = vmatpush1.msra.mxu0 %v231
    %233 = vmatprep.subr.mxu0 0.0
    %234 = vmatpush2.msra.mxu0 0.0
    %235 = vmatprep.subr.mxu0 0.0
    %236 = vmatpush2.msra.mxu0 0.0
    %237 = vmatprep.subr.mxu0 0.0
    %238 = vmatpush2.msra.mxu0 0.0
    %239 = vmatprep.subr.mxu0 0.0
    %240 = vmatpush2.msra.mxu0 0.0
    %241 = vmatprep.subr.mxu0 0.0
    %242 = vmatpush2.msra.mxu0 0.0
    %243 = vmatprep.subr.mxu0 0.0
    %244 = vmatpush2.msra.mxu0 0.0
    %245 = vmatprep.subr.mxu0 0.0
    %246 = vmatpush2.msra.mxu0 0.0
    %247 = vmatprep.subr.mxu0 0.0
    %248 = vmatpush2.msra.mxu0 0.0
    %249 = vmatprep.subr.mxu0 0.0
    %250 = vmatpush2.msra.mxu0 0.0
    %251 = vmatprep.subr.mxu0 0.0
    %252 = vmatpush2.msra.mxu0 0.0
    %253 = vmatprep.subr.mxu0 0.0
    %254 = vmatpush2.msra.mxu0 0.0
    %255 = vmatprep.subr.mxu0 0.0
    %256 = vmatpush2.msra.mxu0 0.0
    %257 = vmatprep.subr.mxu0 0.0
    %258 = vmatpush2.msra.mxu0 0.0
    %259 = vmatprep.subr.mxu0 0.0
    %260 = vmatpush2.msra.mxu0 0.0
    %261 = vmatprep.subr.mxu0 0.0
    %262 = vmatpush2.msra.mxu0 0.0
    %263 = vmatprep.subr.mxu0 0.0
    %264 = vmatpush2.msra.mxu0 0.0
    %265 = vmatprep.mubr.f32.mxu0 0.0
    %v266 = vand.u32 %v41, 4294901760
    %v267 = vsub.f32 %v41, %v266
    %268 = vmatmul.mubr.f32.gmra.mxu0 %v267
    %v269 = vpop.f32.mrf.mxu0
    %v270 = vadd.f32 %v196, %v269
    %v271 = vpop.f32.mrf.mxu0
    %272 = vdwg.mxu0
    %273 = vmatprep.subr.mxu0 0.0
    %274 = vmatpush1.msra.mxu0 0.0
    %275 = vmatprep.subr.mxu0 0.0
    %276 = vmatpush1.msra.mxu0 0.0
    %277 = vmatprep.subr.mxu0 0.0
    %278 = vmatpush1.msra.mxu0 0.0
    %279 = vmatprep.subr.mxu0 0.0
    %280 = vmatpush1.msra.mxu0 0.0
    %281 = vmatprep.subr.mxu0 0.0
    %282 = vmatpush1.msra.mxu0 0.0
    %283 = vmatprep.subr.mxu0 0.0
    %284 = vmatpush1.msra.mxu0 0.0
    %285 = vmatprep.subr.mxu0 0.0
    %286 = vmatpush1.msra.mxu0 0.0
    %287 = vmatprep.subr.mxu0 0.0
    %288 = vmatpush1.msra.mxu0 0.0
    %289 = vmatprep.subr.mxu0 0.0
    %290 = vmatpush1.msra.mxu0 0.0
    %291 = vmatprep.subr.mxu0 0.0
    %292 = vmatpush1.msra.mxu0 0.0
    %293 = vmatprep.subr.mxu0 0.0
    %294 = vmatpush1.msra.mxu0 0.0
    %295 = vmatprep.subr.mxu0 0.0
    %296 = vmatpush1.msra.mxu0 0.0
    %297 = vmatprep.subr.mxu0 0.0
    %298 = vmatpush1.msra.mxu0 0.0
    %299 = vmatprep.subr.mxu0 0.0
    %300 = vmatpush1.msra.mxu0 0.0
    %301 = vmatprep.subr.mxu0 0.0
    %302 = vmatpush1.msra.mxu0 0.0
    %303 = vmatprep.subr.mxu0 0.0
    %v304 = vand.u32 %v45, 4294901760
    %305 = vmatpush1.msra.mxu0 %v304
    %306 = vmatprep.subr.mxu0 0.0
    %307 = vmatpush2.msra.mxu0 0.0
    %308 = vmatprep.subr.mxu0 0.0
    %309 = vmatpush2.msra.mxu0 0.0
    %310 = vmatprep.subr.mxu0 0.0
    %311 = vmatpush2.msra.mxu0 0.0
    %312 = vmatprep.subr.mxu0 0.0
    %313 = vmatpush2.msra.mxu0 0.0
    %314 = vmatprep.subr.mxu0 0.0
    %315 = vmatpush2.msra.mxu0 0.0
    %316 = vmatprep.subr.mxu0 0.0
    %317 = vmatpush2.msra.mxu0 0.0
    %318 = vmatprep.subr.mxu0 0.0
    %319 = vmatpush2.msra.mxu0 0.0
    %320 = vmatprep.subr.mxu0 0.0
    %321 = vmatpush2.msra.mxu0 0.0
    %322 = vmatprep.subr.mxu0 0.0
    %323 = vmatpush2.msra.mxu0 0.0
    %324 = vmatprep.subr.mxu0 0.0
    %325 = vmatpush2.msra.mxu0 0.0
    %326 = vmatprep.subr.mxu0 0.0
    %327 = vmatpush2.msra.mxu0 0.0
    %328 = vmatprep.subr.mxu0 0.0
    %329 = vmatpush2.msra.mxu0 0.0
    %330 = vmatprep.subr.mxu0 0.0
    %331 = vmatpush2.msra.mxu0 0.0
    %332 = vmatprep.subr.mxu0 0.0
    %333 = vmatpush2.msra.mxu0 0.0
    %334 = vmatprep.subr.mxu0 0.0
    %335 = vmatpush2.msra.mxu0 0.0
    %336 = vmatprep.subr.mxu0 0.0
    %337 = vmatpush2.msra.mxu0 0.0
    %338 = vmatprep.mubr.f32.mxu0 0.0
    %v339 = vand.u32 %v41, 4294901760
    %v340 = vsub.f32 %v41, %v339
    %v341 = vand.u32 %v340, 4294901760
    %342 = vmatmul.mubr.f32.gmra.mxu0 %v341
    %v343 = vpop.f32.mrf.mxu0
    %v344 = vadd.f32 %v270, %v343
    %v345 = vpop.f32.mrf.mxu0
    %346 = vdwg.mxu0
    %347 = vmatprep.subr.mxu0 0.0
    %348 = vmatpush1.msra.mxu0 0.0
    %349 = vmatprep.subr.mxu0 0.0
    %350 = vmatpush1.msra.mxu0 0.0
    %351 = vmatprep.subr.mxu0 0.0
    %352 = vmatpush1.msra.mxu0 0.0
    %353 = vmatprep.subr.mxu0 0.0
    %354 = vmatpush1.msra.mxu0 0.0
    %355 = vmatprep.subr.mxu0 0.0
    %356 = vmatpush1.msra.mxu0 0.0
    %357 = vmatprep.subr.mxu0 0.0
    %358 = vmatpush1.msra.mxu0 0.0
    %359 = vmatprep.subr.mxu0 0.0
    %360 = vmatpush1.msra.mxu0 0.0
    %361 = vmatprep.subr.mxu0 0.0
    %362 = vmatpush1.msra.mxu0 0.0
    %363 = vmatprep.subr.mxu0 0.0
    %364 = vmatpush1.msra.mxu0 0.0
    %365 = vmatprep.subr.mxu0 0.0
    %366 = vmatpush1.msra.mxu0 0.0
    %367 = vmatprep.subr.mxu0 0.0
    %368 = vmatpush1.msra.mxu0 0.0
    %369 = vmatprep.subr.mxu0 0.0
    %370 = vmatpush1.msra.mxu0 0.0
    %371 = vmatprep.subr.mxu0 0.0
    %372 = vmatpush1.msra.mxu0 0.0
    %373 = vmatprep.subr.mxu0 0.0
    %374 = vmatpush1.msra.mxu0 0.0
    %375 = vmatprep.subr.mxu0 0.0
    %376 = vmatpush1.msra.mxu0 0.0
    %377 = vmatprep.subr.mxu0 0.0
    %v378 = vand.u32 %v45, 4294901760
    %v379 = vsub.f32 %v45, %v378
    %v380 = vand.u32 %v379, 4294901760
    %381 = vmatpush1.msra.mxu0 %v380
    %382 = vmatprep.subr.mxu0 0.0
    %383 = vmatpush2.msra.mxu0 0.0
    %384 = vmatprep.subr.mxu0 0.0
    %385 = vmatpush2.msra.mxu0 0.0
    %386 = vmatprep.subr.mxu0 0.0
    %387 = vmatpush2.msra.mxu0 0.0
    %388 = vmatprep.subr.mxu0 0.0
    %389 = vmatpush2.msra.mxu0 0.0
    %390 = vmatprep.subr.mxu0 0.0
    %391 = vmatpush2.msra.mxu0 0.0
    %392 = vmatprep.subr.mxu0 0.0
    %393 = vmatpush2.msra.mxu0 0.0
    %394 = vmatprep.subr.mxu0 0.0
    %395 = vmatpush2.msra.mxu0 0.0
    %396 = vmatprep.subr.mxu0 0.0
    %397 = vmatpush2.msra.mxu0 0.0
    %398 = vmatprep.subr.mxu0 0.0
    %399 = vmatpush2.msra.mxu0 0.0
    %400 = vmatprep.subr.mxu0 0.0
    %401 = vmatpush2.msra.mxu0 0.0
    %402 = vmatprep.subr.mxu0 0.0
    %403 = vmatpush2.msra.mxu0 0.0
    %404 = vmatprep.subr.mxu0 0.0
    %405 = vmatpush2.msra.mxu0 0.0
    %406 = vmatprep.subr.mxu0 0.0
    %407 = vmatpush2.msra.mxu0 0.0
    %408 = vmatprep.subr.mxu0 0.0
    %409 = vmatpush2.msra.mxu0 0.0
    %410 = vmatprep.subr.mxu0 0.0
    %411 = vmatpush2.msra.mxu0 0.0
    %412 = vmatprep.subr.mxu0 0.0
    %413 = vmatpush2.msra.mxu0 0.0
    %414 = vmatprep.mubr.f32.mxu0 0.0
    %v415 = vand.u32 %v41, 4294901760
    %416 = vmatmul.mubr.f32.gmra.mxu0 %v415
    %v417 = vpop.f32.mrf.mxu0
    %v418 = vadd.f32 %v344, %v417
    %v419 = vpop.f32.mrf.mxu0
    %420 = vdwg.mxu0
    %421 = vmatprep.subr.mxu0 0.0
    %422 = vmatpush1.msra.mxu0 0.0
    %423 = vmatprep.subr.mxu0 0.0
    %424 = vmatpush1.msra.mxu0 0.0
    %425 = vmatprep.subr.mxu0 0.0
    %426 = vmatpush1.msra.mxu0 0.0
    %427 = vmatprep.subr.mxu0 0.0
    %428 = vmatpush1.msra.mxu0 0.0
    %429 = vmatprep.subr.mxu0 0.0
    %430 = vmatpush1.msra.mxu0 0.0
    %431 = vmatprep.subr.mxu0 0.0
    %432 = vmatpush1.msra.mxu0 0.0
    %433 = vmatprep.subr.mxu0 0.0
    %434 = vmatpush1.msra.mxu0 0.0
    %435 = vmatprep.subr.mxu0 0.0
    %436 = vmatpush1.msra.mxu0 0.0
    %437 = vmatprep.subr.mxu0 0.0
    %438 = vmatpush1.msra.mxu0 0.0
    %439 = vmatprep.subr.mxu0 0.0
    %440 = vmatpush1.msra.mxu0 0.0
    %441 = vmatprep.subr.mxu0 0.0
    %442 = vmatpush1.msra.mxu0 0.0
    %443 = vmatprep.subr.mxu0 0.0
    %444 = vmatpush1.msra.mxu0 0.0
    %445 = vmatprep.subr.mxu0 0.0
    %446 = vmatpush1.msra.mxu0 0.0
    %447 = vmatprep.subr.mxu0 0.0
    %448 = vmatpush1.msra.mxu0 0.0
    %449 = vmatprep.subr.mxu0 0.0
    %450 = vmatpush1.msra.mxu0 0.0
    %451 = vmatprep.subr.mxu0 0.0
    %v452 = vand.u32 %v45, 4294901760
    %453 = vmatpush1.msra.mxu0 %v452
    %454 = vmatprep.subr.mxu0 0.0
    %455 = vmatpush2.msra.mxu0 0.0
    %456 = vmatprep.subr.mxu0 0.0
    %457 = vmatpush2.msra.mxu0 0.0
    %458 = vmatprep.subr.mxu0 0.0
    %459 = vmatpush2.msra.mxu0 0.0
    %460 = vmatprep.subr.mxu0 0.0
    %461 = vmatpush2.msra.mxu0 0.0
    %462 = vmatprep.subr.mxu0 0.0
    %463 = vmatpush2.msra.mxu0 0.0
    %464 = vmatprep.subr.mxu0 0.0
    %465 = vmatpush2.msra.mxu0 0.0
    %466 = vmatprep.subr.mxu0 0.0
    %467 = vmatpush2.msra.mxu0 0.0
    %468 = vmatprep.subr.mxu0 0.0
    %469 = vmatpush2.msra.mxu0 0.0
    %470 = vmatprep.subr.mxu0 0.0
    %471 = vmatpush2.msra.mxu0 0.0
    %472 = vmatprep.subr.mxu0 0.0
    %473 = vmatpush2.msra.mxu0 0.0
    %474 = vmatprep.subr.mxu0 0.0
    %475 = vmatpush2.msra.mxu0 0.0
    %476 = vmatprep.subr.mxu0 0.0
    %477 = vmatpush2.msra.mxu0 0.0
    %478 = vmatprep.subr.mxu0 0.0
    %479 = vmatpush2.msra.mxu0 0.0
    %480 = vmatprep.subr.mxu0 0.0
    %481 = vmatpush2.msra.mxu0 0.0
    %482 = vmatprep.subr.mxu0 0.0
    %483 = vmatpush2.msra.mxu0 0.0
    %484 = vmatprep.subr.mxu0 0.0
    %485 = vmatpush2.msra.mxu0 0.0
    %486 = vmatprep.mubr.f32.mxu0 0.0
    %v487 = vand.u32 %v41, 4294901760
    %488 = vmatmul.mubr.f32.gmra.mxu0 %v487
    %v489 = vpop.f32.mrf.mxu0
    %v490 = vadd.f32 %v418, %v489
    %v491 = vpop.f32.mrf.mxu0
    %492 = vdwg.mxu0
    %v493 = vld [vmem:[%s2] sm:$0x1f]
    %494 = vrot.lane.b32.xlu0 %v15, 117
    %v495 = vpop.permute.xlu0 %494
    %v496 = vsel %vm39, %v495, 0
    %v499 = vsel %vm43, %v493, 0
    %501 = vmatprep.subr.mxu0 0.0
    %502 = vmatpush1.msra.mxu0 0.0
    %503 = vmatprep.subr.mxu0 0.0
    %504 = vmatpush1.msra.mxu0 0.0
    %505 = vmatprep.subr.mxu0 0.0
    %506 = vmatpush1.msra.mxu0 0.0
    %507 = vmatprep.subr.mxu0 0.0
    %508 = vmatpush1.msra.mxu0 0.0
    %509 = vmatprep.subr.mxu0 0.0
    %510 = vmatpush1.msra.mxu0 0.0
    %511 = vmatprep.subr.mxu0 0.0
    %512 = vmatpush1.msra.mxu0 0.0
    %513 = vmatprep.subr.mxu0 0.0
    %514 = vmatpush1.msra.mxu0 0.0
    %515 = vmatprep.subr.mxu0 0.0
    %516 = vmatpush1.msra.mxu0 0.0
    %517 = vmatprep.subr.mxu0 0.0
    %518 = vmatpush1.msra.mxu0 0.0
    %519 = vmatprep.subr.mxu0 0.0
    %520 = vmatpush1.msra.mxu0 0.0
    %521 = vmatprep.subr.mxu0 0.0
    %522 = vmatpush1.msra.mxu0 0.0
    %523 = vmatprep.subr.mxu0 0.0
    %524 = vmatpush1.msra.mxu0 0.0
    %525 = vmatprep.subr.mxu0 0.0
    %526 = vmatpush1.msra.mxu0 0.0
    %527 = vmatprep.subr.mxu0 0.0
    %528 = vmatpush1.msra.mxu0 0.0
    %529 = vmatprep.subr.mxu0 0.0
    %530 = vmatpush1.msra.mxu0 0.0
    %531 = vmatprep.subr.mxu0 0.0
    %v532 = vand.u32 %v499, 4294901760
    %533 = vmatpush1.msra.mxu0 %v532
    %534 = vmatprep.subr.mxu0 0.0
    %535 = vmatpush2.msra.mxu0 0.0
    %536 = vmatprep.subr.mxu0 0.0
    %537 = vmatpush2.msra.mxu0 0.0
    %538 = vmatprep.subr.mxu0 0.0
    %539 = vmatpush2.msra.mxu0 0.0
    %540 = vmatprep.subr.mxu0 0.0
    %541 = vmatpush2.msra.mxu0 0.0
    %542 = vmatprep.subr.mxu0 0.0
    %543 = vmatpush2.msra.mxu0 0.0
    %544 = vmatprep.subr.mxu0 0.0
    %545 = vmatpush2.msra.mxu0 0.0
    %546 = vmatprep.subr.mxu0 0.0
    %547 = vmatpush2.msra.mxu0 0.0
    %548 = vmatprep.subr.mxu0 0.0
    %549 = vmatpush2.msra.mxu0 0.0
    %550 = vmatprep.subr.mxu0 0.0
    %551 = vmatpush2.msra.mxu0 0.0
    %552 = vmatprep.subr.mxu0 0.0
    %553 = vmatpush2.msra.mxu0 0.0
    %554 = vmatprep.subr.mxu0 0.0
    %555 = vmatpush2.msra.mxu0 0.0
    %556 = vmatprep.subr.mxu0 0.0
    %557 = vmatpush2.msra.mxu0 0.0
    %558 = vmatprep.subr.mxu0 0.0
    %559 = vmatpush2.msra.mxu0 0.0
    %560 = vmatprep.subr.mxu0 0.0
    %561 = vmatpush2.msra.mxu0 0.0
    %562 = vmatprep.subr.mxu0 0.0
    %563 = vmatpush2.msra.mxu0 0.0
    %564 = vmatprep.subr.mxu0 0.0
    %565 = vmatpush2.msra.mxu0 0.0
    %566 = vmatprep.mubr.f32.mxu0 0.0
    %v567 = vand.u32 %v496, 4294901760
    %v568 = vsub.f32 %v496, %v567
    %v569 = vand.u32 %v568, 4294901760
    %v570 = vsub.f32 %v568, %v569
    %v571 = vand.u32 %v570, 4294901760
    %572 = vmatmul.mubr.f32.gmra.mxu0 %v571
    %v573 = vpop.f32.mrf.mxu0
    %v574 = vadd.f32 0.0, %v573
    %v575 = vpop.f32.mrf.mxu0
    %576 = vdwg.mxu0
    %577 = vmatprep.subr.mxu0 0.0
    %578 = vmatpush1.msra.mxu0 0.0
    %579 = vmatprep.subr.mxu0 0.0
    %580 = vmatpush1.msra.mxu0 0.0
    %581 = vmatprep.subr.mxu0 0.0
    %582 = vmatpush1.msra.mxu0 0.0
    %583 = vmatprep.subr.mxu0 0.0
    %584 = vmatpush1.msra.mxu0 0.0
    %585 = vmatprep.subr.mxu0 0.0
    %586 = vmatpush1.msra.mxu0 0.0
    %587 = vmatprep.subr.mxu0 0.0
    %588 = vmatpush1.msra.mxu0 0.0
    %589 = vmatprep.subr.mxu0 0.0
    %590 = vmatpush1.msra.mxu0 0.0
    %591 = vmatprep.subr.mxu0 0.0
    %592 = vmatpush1.msra.mxu0 0.0
    %593 = vmatprep.subr.mxu0 0.0
    %594 = vmatpush1.msra.mxu0 0.0
    %595 = vmatprep.subr.mxu0 0.0
    %596 = vmatpush1.msra.mxu0 0.0
    %597 = vmatprep.subr.mxu0 0.0
    %598 = vmatpush1.msra.mxu0 0.0
    %599 = vmatprep.subr.mxu0 0.0
    %600 = vmatpush1.msra.mxu0 0.0
    %601 = vmatprep.subr.mxu0 0.0
    %602 = vmatpush1.msra.mxu0 0.0
    %603 = vmatprep.subr.mxu0 0.0
    %604 = vmatpush1.msra.mxu0 0.0
    %605 = vmatprep.subr.mxu0 0.0
    %606 = vmatpush1.msra.mxu0 0.0
    %607 = vmatprep.subr.mxu0 0.0
    %v608 = vand.u32 %v499, 4294901760
    %v609 = vsub.f32 %v499, %v608
    %v610 = vand.u32 %v609, 4294901760
    %v611 = vsub.f32 %v609, %v610
    %v612 = vand.u32 %v611, 4294901760
    %613 = vmatpush1.msra.mxu0 %v612
    %614 = vmatprep.subr.mxu0 0.0
    %615 = vmatpush2.msra.mxu0 0.0
    %616 = vmatprep.subr.mxu0 0.0
    %617 = vmatpush2.msra.mxu0 0.0
    %618 = vmatprep.subr.mxu0 0.0
    %619 = vmatpush2.msra.mxu0 0.0
    %620 = vmatprep.subr.mxu0 0.0
    %621 = vmatpush2.msra.mxu0 0.0
    %622 = vmatprep.subr.mxu0 0.0
    %623 = vmatpush2.msra.mxu0 0.0
    %624 = vmatprep.subr.mxu0 0.0
    %625 = vmatpush2.msra.mxu0 0.0
    %626 = vmatprep.subr.mxu0 0.0
    %627 = vmatpush2.msra.mxu0 0.0
    %628 = vmatprep.subr.mxu0 0.0
    %629 = vmatpush2.msra.mxu0 0.0
    %630 = vmatprep.subr.mxu0 0.0
    %631 = vmatpush2.msra.mxu0 0.0
    %632 = vmatprep.subr.mxu0 0.0
    %633 = vmatpush2.msra.mxu0 0.0
    %634 = vmatprep.subr.mxu0 0.0
    %635 = vmatpush2.msra.mxu0 0.0
    %636 = vmatprep.subr.mxu0 0.0
    %637 = vmatpush2.msra.mxu0 0.0
    %638 = vmatprep.subr.mxu0 0.0
    %639 = vmatpush2.msra.mxu0 0.0
    %640 = vmatprep.subr.mxu0 0.0
    %641 = vmatpush2.msra.mxu0 0.0
    %642 = vmatprep.subr.mxu0 0.0
    %643 = vmatpush2.msra.mxu0 0.0
    %644 = vmatprep.subr.mxu0 0.0
    %645 = vmatpush2.msra.mxu0 0.0
    %646 = vmatprep.mubr.f32.mxu0 0.0
    %v647 = vand.u32 %v496, 4294901760
    %648 = vmatmul.mubr.f32.gmra.mxu0 %v647
    %v649 = vpop.f32.mrf.mxu0
    %v650 = vadd.f32 %v574, %v649
    %v651 = vpop.f32.mrf.mxu0
    %652 = vdwg.mxu0
    %653 = vmatprep.subr.mxu0 0.0
    %654 = vmatpush1.msra.mxu0 0.0
    %655 = vmatprep.subr.mxu0 0.0
    %656 = vmatpush1.msra.mxu0 0.0
    %657 = vmatprep.subr.mxu0 0.0
    %658 = vmatpush1.msra.mxu0 0.0
    %659 = vmatprep.subr.mxu0 0.0
    %660 = vmatpush1.msra.mxu0 0.0
    %661 = vmatprep.subr.mxu0 0.0
    %662 = vmatpush1.msra.mxu0 0.0
    %663 = vmatprep.subr.mxu0 0.0
    %664 = vmatpush1.msra.mxu0 0.0
    %665 = vmatprep.subr.mxu0 0.0
    %666 = vmatpush1.msra.mxu0 0.0
    %667 = vmatprep.subr.mxu0 0.0
    %668 = vmatpush1.msra.mxu0 0.0
    %669 = vmatprep.subr.mxu0 0.0
    %670 = vmatpush1.msra.mxu0 0.0
    %671 = vmatprep.subr.mxu0 0.0
    %672 = vmatpush1.msra.mxu0 0.0
    %673 = vmatprep.subr.mxu0 0.0
    %674 = vmatpush1.msra.mxu0 0.0
    %675 = vmatprep.subr.mxu0 0.0
    %676 = vmatpush1.msra.mxu0 0.0
    %677 = vmatprep.subr.mxu0 0.0
    %678 = vmatpush1.msra.mxu0 0.0
    %679 = vmatprep.subr.mxu0 0.0
    %680 = vmatpush1.msra.mxu0 0.0
    %681 = vmatprep.subr.mxu0 0.0
    %682 = vmatpush1.msra.mxu0 0.0
    %683 = vmatprep.subr.mxu0 0.0
    %v684 = vand.u32 %v499, 4294901760
    %v685 = vsub.f32 %v499, %v684
    %686 = vmatpush1.msra.mxu0 %v685
    %687 = vmatprep.subr.mxu0 0.0
    %688 = vmatpush2.msra.mxu0 0.0
    %689 = vmatprep.subr.mxu0 0.0
    %690 = vmatpush2.msra.mxu0 0.0
    %691 = vmatprep.subr.mxu0 0.0
    %692 = vmatpush2.msra.mxu0 0.0
    %693 = vmatprep.subr.mxu0 0.0
    %694 = vmatpush2.msra.mxu0 0.0
    %695 = vmatprep.subr.mxu0 0.0
    %696 = vmatpush2.msra.mxu0 0.0
    %697 = vmatprep.subr.mxu0 0.0
    %698 = vmatpush2.msra.mxu0 0.0
    %699 = vmatprep.subr.mxu0 0.0
    %700 = vmatpush2.msra.mxu0 0.0
    %701 = vmatprep.subr.mxu0 0.0
    %702 = vmatpush2.msra.mxu0 0.0
    %703 = vmatprep.subr.mxu0 0.0
    %704 = vmatpush2.msra.mxu0 0.0
    %705 = vmatprep.subr.mxu0 0.0
    %706 = vmatpush2.msra.mxu0 0.0
    %707 = vmatprep.subr.mxu0 0.0
    %708 = vmatpush2.msra.mxu0 0.0
    %709 = vmatprep.subr.mxu0 0.0
    %710 = vmatpush2.msra.mxu0 0.0
    %711 = vmatprep.subr.mxu0 0.0
    %712 = vmatpush2.msra.mxu0 0.0
    %713 = vmatprep.subr.mxu0 0.0
    %714 = vmatpush2.msra.mxu0 0.0
    %715 = vmatprep.subr.mxu0 0.0
    %716 = vmatpush2.msra.mxu0 0.0
    %717 = vmatprep.subr.mxu0 0.0
    %718 = vmatpush2.msra.mxu0 0.0
    %719 = vmatprep.mubr.f32.mxu0 0.0
    %v720 = vand.u32 %v496, 4294901760
    %v721 = vsub.f32 %v496, %v720
    %722 = vmatmul.mubr.f32.gmra.mxu0 %v721
    %v723 = vpop.f32.mrf.mxu0
    %v724 = vadd.f32 %v650, %v723
    %v725 = vpop.f32.mrf.mxu0
    %726 = vdwg.mxu0
    %727 = vmatprep.subr.mxu0 0.0
    %728 = vmatpush1.msra.mxu0 0.0
    %729 = vmatprep.subr.mxu0 0.0
    %730 = vmatpush1.msra.mxu0 0.0
    %731 = vmatprep.subr.mxu0 0.0
    %732 = vmatpush1.msra.mxu0 0.0
    %733 = vmatprep.subr.mxu0 0.0
    %734 = vmatpush1.msra.mxu0 0.0
    %735 = vmatprep.subr.mxu0 0.0
    %736 = vmatpush1.msra.mxu0 0.0
    %737 = vmatprep.subr.mxu0 0.0
    %738 = vmatpush1.msra.mxu0 0.0
    %739 = vmatprep.subr.mxu0 0.0
    %740 = vmatpush1.msra.mxu0 0.0
    %741 = vmatprep.subr.mxu0 0.0
    %742 = vmatpush1.msra.mxu0 0.0
    %743 = vmatprep.subr.mxu0 0.0
    %744 = vmatpush1.msra.mxu0 0.0
    %745 = vmatprep.subr.mxu0 0.0
    %746 = vmatpush1.msra.mxu0 0.0
    %747 = vmatprep.subr.mxu0 0.0
    %748 = vmatpush1.msra.mxu0 0.0
    %749 = vmatprep.subr.mxu0 0.0
    %750 = vmatpush1.msra.mxu0 0.0
    %751 = vmatprep.subr.mxu0 0.0
    %752 = vmatpush1.msra.mxu0 0.0
    %753 = vmatprep.subr.mxu0 0.0
    %754 = vmatpush1.msra.mxu0 0.0
    %755 = vmatprep.subr.mxu0 0.0
    %756 = vmatpush1.msra.mxu0 0.0
    %757 = vmatprep.subr.mxu0 0.0
    %v758 = vand.u32 %v499, 4294901760
    %759 = vmatpush1.msra.mxu0 %v758
    %760 = vmatprep.subr.mxu0 0.0
    %761 = vmatpush2.msra.mxu0 0.0
    %762 = vmatprep.subr.mxu0 0.0
    %763 = vmatpush2.msra.mxu0 0.0
    %764 = vmatprep.subr.mxu0 0.0
    %765 = vmatpush2.msra.mxu0 0.0
    %766 = vmatprep.subr.mxu0 0.0
    %767 = vmatpush2.msra.mxu0 0.0
    %768 = vmatprep.subr.mxu0 0.0
    %769 = vmatpush2.msra.mxu0 0.0
    %770 = vmatprep.subr.mxu0 0.0
    %771 = vmatpush2.msra.mxu0 0.0
    %772 = vmatprep.subr.mxu0 0.0
    %773 = vmatpush2.msra.mxu0 0.0
    %774 = vmatprep.subr.mxu0 0.0
    %775 = vmatpush2.msra.mxu0 0.0
    %776 = vmatprep.subr.mxu0 0.0
    %777 = vmatpush2.msra.mxu0 0.0
    %778 = vmatprep.subr.mxu0 0.0
    %779 = vmatpush2.msra.mxu0 0.0
    %780 = vmatprep.subr.mxu0 0.0
    %781 = vmatpush2.msra.mxu0 0.0
    %782 = vmatprep.subr.mxu0 0.0
    %783 = vmatpush2.msra.mxu0 0.0
    %784 = vmatprep.subr.mxu0 0.0
    %785 = vmatpush2.msra.mxu0 0.0
    %786 = vmatprep.subr.mxu0 0.0
    %787 = vmatpush2.msra.mxu0 0.0
    %788 = vmatprep.subr.mxu0 0.0
    %789 = vmatpush2.msra.mxu0 0.0
    %790 = vmatprep.subr.mxu0 0.0
    %791 = vmatpush2.msra.mxu0 0.0
    %792 = vmatprep.mubr.f32.mxu0 0.0
    %v793 = vand.u32 %v496, 4294901760
    %v794 = vsub.f32 %v496, %v793
    %v795 = vand.u32 %v794, 4294901760
    %796 = vmatmul.mubr.f32.gmra.mxu0 %v795
    %v797 = vpop.f32.mrf.mxu0
    %v798 = vadd.f32 %v724, %v797
    %v799 = vpop.f32.mrf.mxu0
    %800 = vdwg.mxu0
    %801 = vmatprep.subr.mxu0 0.0
    %802 = vmatpush1.msra.mxu0 0.0
    %803 = vmatprep.subr.mxu0 0.0
    %804 = vmatpush1.msra.mxu0 0.0
    %805 = vmatprep.subr.mxu0 0.0
    %806 = vmatpush1.msra.mxu0 0.0
    %807 = vmatprep.subr.mxu0 0.0
    %808 = vmatpush1.msra.mxu0 0.0
    %809 = vmatprep.subr.mxu0 0.0
    %810 = vmatpush1.msra.mxu0 0.0
    %811 = vmatprep.subr.mxu0 0.0
    %812 = vmatpush1.msra.mxu0 0.0
    %813 = vmatprep.subr.mxu0 0.0
    %814 = vmatpush1.msra.mxu0 0.0
    %815 = vmatprep.subr.mxu0 0.0
    %816 = vmatpush1.msra.mxu0 0.0
    %817 = vmatprep.subr.mxu0 0.0
    %818 = vmatpush1.msra.mxu0 0.0
    %819 = vmatprep.subr.mxu0 0.0
    %820 = vmatpush1.msra.mxu0 0.0
    %821 = vmatprep.subr.mxu0 0.0
    %822 = vmatpush1.msra.mxu0 0.0
    %823 = vmatprep.subr.mxu0 0.0
    %824 = vmatpush1.msra.mxu0 0.0
    %825 = vmatprep.subr.mxu0 0.0
    %826 = vmatpush1.msra.mxu0 0.0
    %827 = vmatprep.subr.mxu0 0.0
    %828 = vmatpush1.msra.mxu0 0.0
    %829 = vmatprep.subr.mxu0 0.0
    %830 = vmatpush1.msra.mxu0 0.0
    %831 = vmatprep.subr.mxu0 0.0
    %v832 = vand.u32 %v499, 4294901760
    %v833 = vsub.f32 %v499, %v832
    %v834 = vand.u32 %v833, 4294901760
    %835 = vmatpush1.msra.mxu0 %v834
    %836 = vmatprep.subr.mxu0 0.0
    %837 = vmatpush2.msra.mxu0 0.0
    %838 = vmatprep.subr.mxu0 0.0
    %839 = vmatpush2.msra.mxu0 0.0
    %840 = vmatprep.subr.mxu0 0.0
    %841 = vmatpush2.msra.mxu0 0.0
    %842 = vmatprep.subr.mxu0 0.0
    %843 = vmatpush2.msra.mxu0 0.0
    %844 = vmatprep.subr.mxu0 0.0
    %845 = vmatpush2.msra.mxu0 0.0
    %846 = vmatprep.subr.mxu0 0.0
    %847 = vmatpush2.msra.mxu0 0.0
    %848 = vmatprep.subr.mxu0 0.0
    %849 = vmatpush2.msra.mxu0 0.0
    %850 = vmatprep.subr.mxu0 0.0
    %851 = vmatpush2.msra.mxu0 0.0
    %852 = vmatprep.subr.mxu0 0.0
    %853 = vmatpush2.msra.mxu0 0.0
    %854 = vmatprep.subr.mxu0 0.0
    %855 = vmatpush2.msra.mxu0 0.0
    %856 = vmatprep.subr.mxu0 0.0
    %857 = vmatpush2.msra.mxu0 0.0
    %858 = vmatprep.subr.mxu0 0.0
    %859 = vmatpush2.msra.mxu0 0.0
    %860 = vmatprep.subr.mxu0 0.0
    %861 = vmatpush2.msra.mxu0 0.0
    %862 = vmatprep.subr.mxu0 0.0
    %863 = vmatpush2.msra.mxu0 0.0
    %864 = vmatprep.subr.mxu0 0.0
    %865 = vmatpush2.msra.mxu0 0.0
    %866 = vmatprep.subr.mxu0 0.0
    %867 = vmatpush2.msra.mxu0 0.0
    %868 = vmatprep.mubr.f32.mxu0 0.0
    %v869 = vand.u32 %v496, 4294901760
    %870 = vmatmul.mubr.f32.gmra.mxu0 %v869
    %v871 = vpop.f32.mrf.mxu0
    %v872 = vadd.f32 %v798, %v871
    %v873 = vpop.f32.mrf.mxu0
    %874 = vdwg.mxu0
    %875 = vmatprep.subr.mxu0 0.0
    %876 = vmatpush1.msra.mxu0 0.0
    %877 = vmatprep.subr.mxu0 0.0
    %878 = vmatpush1.msra.mxu0 0.0
    %879 = vmatprep.subr.mxu0 0.0
    %880 = vmatpush1.msra.mxu0 0.0
    %881 = vmatprep.subr.mxu0 0.0
    %882 = vmatpush1.msra.mxu0 0.0
    %883 = vmatprep.subr.mxu0 0.0
    %884 = vmatpush1.msra.mxu0 0.0
    %885 = vmatprep.subr.mxu0 0.0
    %886 = vmatpush1.msra.mxu0 0.0
    %887 = vmatprep.subr.mxu0 0.0
    %888 = vmatpush1.msra.mxu0 0.0
    %889 = vmatprep.subr.mxu0 0.0
    %890 = vmatpush1.msra.mxu0 0.0
    %891 = vmatprep.subr.mxu0 0.0
    %892 = vmatpush1.msra.mxu0 0.0
    %893 = vmatprep.subr.mxu0 0.0
    %894 = vmatpush1.msra.mxu0 0.0
    %895 = vmatprep.subr.mxu0 0.0
    %896 = vmatpush1.msra.mxu0 0.0
    %897 = vmatprep.subr.mxu0 0.0
    %898 = vmatpush1.msra.mxu0 0.0
    %899 = vmatprep.subr.mxu0 0.0
    %900 = vmatpush1.msra.mxu0 0.0
    %901 = vmatprep.subr.mxu0 0.0
    %902 = vmatpush1.msra.mxu0 0.0
    %903 = vmatprep.subr.mxu0 0.0
    %904 = vmatpush1.msra.mxu0 0.0
    %905 = vmatprep.subr.mxu0 0.0
    %v906 = vand.u32 %v499, 4294901760
    %907 = vmatpush1.msra.mxu0 %v906
    %908 = vmatprep.subr.mxu0 0.0
    %909 = vmatpush2.msra.mxu0 0.0
    %910 = vmatprep.subr.mxu0 0.0
    %911 = vmatpush2.msra.mxu0 0.0
    %912 = vmatprep.subr.mxu0 0.0
    %913 = vmatpush2.msra.mxu0 0.0
    %914 = vmatprep.subr.mxu0 0.0
    %915 = vmatpush2.msra.mxu0 0.0
    %916 = vmatprep.subr.mxu0 0.0
    %917 = vmatpush2.msra.mxu0 0.0
    %918 = vmatprep.subr.mxu0 0.0
    %919 = vmatpush2.msra.mxu0 0.0
    %920 = vmatprep.subr.mxu0 0.0
    %921 = vmatpush2.msra.mxu0 0.0
    %922 = vmatprep.subr.mxu0 0.0
    %923 = vmatpush2.msra.mxu0 0.0
    %924 = vmatprep.subr.mxu0 0.0
    %925 = vmatpush2.msra.mxu0 0.0
    %926 = vmatprep.subr.mxu0 0.0
    %927 = vmatpush2.msra.mxu0 0.0
    %928 = vmatprep.subr.mxu0 0.0
    %929 = vmatpush2.msra.mxu0 0.0
    %930 = vmatprep.subr.mxu0 0.0
    %931 = vmatpush2.msra.mxu0 0.0
    %932 = vmatprep.subr.mxu0 0.0
    %933 = vmatpush2.msra.mxu0 0.0
    %934 = vmatprep.subr.mxu0 0.0
    %935 = vmatpush2.msra.mxu0 0.0
    %936 = vmatprep.subr.mxu0 0.0
    %937 = vmatpush2.msra.mxu0 0.0
    %938 = vmatprep.subr.mxu0 0.0
    %939 = vmatpush2.msra.mxu0 0.0
    %940 = vmatprep.mubr.f32.mxu0 0.0
    %v941 = vand.u32 %v496, 4294901760
    %942 = vmatmul.mubr.f32.gmra.mxu0 %v941
    %v943 = vpop.f32.mrf.mxu0
    %v944 = vadd.f32 %v872, %v943
    %v945 = vpop.f32.mrf.mxu0
    %946 = vdwg.mxu0
    %948 = vrot.lane.b32.xlu0 %v37, 2
    %v949 = vpop.permute.xlu0 %948
    %952 = vrot.lane.b32.xlu0 %v944, 14
    %v953 = vpop.permute.xlu0 %952
    %vm955 = vcmask 15360
    %v956 = vsel %vm955, %v490, %v949
    %vm957 = vcmask 113664
    %v958 = vsel %vm957, %v956, %v953
    %vm959 = vcmask 130048
    %960 = vst.msk [vmem:[#allocation2] sm:$0xff] %vm959, %v958
    // Predicated region
    $region14: #{tpu_custom_call.1} parent=1 // pred_check
      _
    $region15: #{tpu_custom_call.1} parent=1 // pred_check_branch
      %962 = sbr.rel (0) target = $region17
    $region16: #{tpu_custom_call.1} parent=1 // pred_region
      %s964 = ssub.s32 128, 128
      %965 = vsyncadd [#allocation3], %s964
      %s967 = sshll.u32 [#allocation2], 4
      %s968 = int_to_ptr.vmem [resolvable:$true] %s967
      %970 = dma.vmem_to_hbm [thread:$0]  %s968, 128, %s3, [#allocation3]
    $region17: #{tpu_custom_call.1} parent=1 // pred_fallthru
      _
    // Predicated region
    $region18: #{tpu_custom_call.1} parent=1 // pred_check
      _
    $region19: #{tpu_custom_call.1} parent=1 // pred_check_branch
      %972 = sbr.rel (0) target = $region21
    $region20: #{tpu_custom_call.1} parent=1 // pred_region
      %973 = dma.done [#allocation3], 128
    $region21: #{tpu_custom_call.1} parent=1 // pred_fallthru
      _
    %974 = vsyncpa [#allocation3], 1

</llo_original>
